<compile_context>
chip_gen: v5e
topology: v5e:2x2
jax: 0.10.0
libtpu: 0.0.40
codegen_flags: <defaults>
</compile_context>

<pallas_src>
import math

import jax
import jax.numpy as jnp
from jax import lax
from jax.experimental import pallas as pl
from jax.experimental.pallas import tpu as pltpu

FLOAT32_EPS = float(jnp.finfo(jnp.float32).eps)  # == torch.finfo(torch.float32).eps

_ROW_ALIGN = 128                      # output-lane / tile alignment for row tiles
_TM_MAX = 8192                        # hard cap on rows per tile
_TILE_BYTES_TARGET = 8 * 1024 * 1024  # streamed bytes per pipeline buffer (x + out)


def _studentt_head_kernel(x_ref, wt_ref, b_ref, out_ref):
    """Fused 3-head Linear + link functions for one row tile.

    x_ref:   (TM, H)    activation tile (native dtype: f32 or bf16)
    wt_ref:  (H, 3*O)   stacked weights, transposed (latched MXU operand)
    b_ref:   (1, 3*O)   stacked biases (f32)
    out_ref: (TM, 3*O)  fused output: cols [0:O]=df, [O:2O]=loc, [2O:3O]=scale
    """
    o = out_ref.shape[-1] // 3

    # x streamed as MXU LHS, tiny weight matrix latched once per step.
    y = jnp.dot(x_ref[...], wt_ref[...], preferred_element_type=jnp.float32)
    y = y + b_ref[...]                      # bias broadcasts over the row axis

    # Numerically stable softplus.  Uses log(1 + t) with t = exp(-|y|) <= 1,
    # which matches log1p-based softplus to ~f32 eps (well below tolerances);
    # exp/log run on the EUP (its own issue slot).
    sp = jnp.maximum(y, 0.0) + jnp.log(1.0 + jnp.exp(-jnp.abs(y)))

    col = lax.broadcasted_iota(jnp.int32, y.shape, 1)
    df_or_scale = jnp.where(col < o, 2.0 + sp, jnp.maximum(sp, FLOAT32_EPS))
    is_loc = jnp.logical_and(col >= o, col < 2 * o)
    out_ref[...] = jnp.where(is_loc, y, df_or_scale)


def _choose_tm(n_rows, hidden, x_itemsize, three_o):
    """VMEM-budget- and megacore-aware row-tile size."""
    bytes_per_row = hidden * x_itemsize + three_o * 4          # x in + f32 out
    tm = _TILE_BYTES_TARGET // max(bytes_per_row, 1)
    tm = max(_ROW_ALIGN, (tm // _ROW_ALIGN) * _ROW_ALIGN)
    tm = min(tm, _TM_MAX)
    if n_rows >= 4 * 512:
        # Ensure >= 4 grid steps so the "parallel" axis can shard across both
        # TensorCores on v7x, without dropping below 512-row tiles.
        tm = min(tm, max(512, (n_rows // 4) // _ROW_ALIGN * _ROW_ALIGN))
    if tm >= n_rows:
        tm = n_rows   # single full-extent block (always layout-legal)
    return tm


def _pick_vmem_limit(est_bytes):
    """Generation-aware VMEM limit with headroom (safe on v5e/v6e/v7x)."""
    phys = 64 << 20                                  # conservative fallback (v7x/TC)
    try:
        phys = int(pltpu.get_tpu_info().vmem_capacity_bytes)
    except Exception:
        pass
    hard_cap = (phys * 3) // 4                       # never ask for > 3/4 of physical
    want = max(32 << 20, (est_bytes * 5) // 4 + (4 << 20))
    return int(min(hard_cap, want, 96 << 20))


def studentt_head_forward(x, w_stacked, b_stacked, target_scale=None):
    """x: (..., H). w_stacked: (3*O, H) (nn.Linear layout, heads stacked).
    b_stacked: (3*O,). Returns (df, loc, scale) in f32, each shaped (...,) if
    O == 1 else (..., O).

    `target_scale` is accepted for signature fidelity with the PyTorch module
    but is unused in its forward (as in the reference).

    NOTE: weights are cast to the activation dtype for the MXU.  Pass f32
    activations for exact nn.Linear parity; bf16 activations are the fast
    path (halves HBM traffic; accumulation/bias/softplus stay f32).
    """
    *lead, H = x.shape
    three_o, H_w = w_stacked.shape
    assert H_w == H and three_o % 3 == 0
    O = three_o // 3
    N = math.prod(lead) if lead else 1

    x2d = x.reshape(N, H)                                  # keep native dtype
    w_t = jnp.transpose(w_stacked).astype(x2d.dtype)       # (H, 3O) latched operand
    b2d = b_stacked.reshape(1, three_o).astype(jnp.float32)

    TM = _choose_tm(N, H, x2d.dtype.itemsize, three_o)
    # No jnp.pad: ragged last block handled by Pallas OOB semantics (padded
    # reads, masked writeback).  Rows are independent; padded rows are sliced
    # away below, so the extra HBM pass a pad would cost is avoided.
    grid_n = pl.cdiv(N, TM)

    est_vmem = (2 * TM * (H * x2d.dtype.itemsize + three_o * 4)
                + H * three_o * w_t.dtype.itemsize + three_o * 4)

    out = pl.pallas_call(
        _studentt_head_kernel,
        out_shape=jax.ShapeDtypeStruct((N, three_o), jnp.float32),
        grid=(grid_n,),
        in_specs=[
            pl.BlockSpec((TM, H), lambda i: (i, 0)),         # streamed x row tiles
            pl.BlockSpec((H, three_o), lambda i: (0, 0)),    # weights resident
            pl.BlockSpec((1, three_o), lambda i: (0, 0)),    # bias resident
        ],
        out_specs=pl.BlockSpec((TM, three_o), lambda i: (i, 0)),
        compiler_params=pltpu.CompilerParams(
            dimension_semantics=("parallel",),               # megacore sharding
            vmem_limit_bytes=_pick_vmem_limit(est_vmem),
        ),
    )(x2d, w_t, b2d)

    df, loc, scale = out[:, :O], out[:, O:2 * O], out[:, 2 * O:]
    shape = tuple(lead) if O == 1 else tuple(lead) + (O,)    # matches .squeeze(-1)
    return df.reshape(shape), loc.reshape(shape), scale.reshape(shape)


def init_params(key, hidden_size, output_size):
    """nn.Linear-style init: uniform(-1/sqrt(H), 1/sqrt(H)); heads stacked."""
    bound = 1.0 / math.sqrt(hidden_size)
    kw, kb = jax.random.split(key)
    w = jax.random.uniform(kw, (3 * output_size, hidden_size),
                           minval=-bound, maxval=bound, dtype=jnp.float32)
    b = jax.random.uniform(kb, (3 * output_size,),
                           minval=-bound, maxval=bound, dtype=jnp.float32)
    return w, b


def _reference(x, w, b):
    """Pure-JAX reference (f32 math) for correctness checking."""
    lead = x.shape[:-1]
    H = x.shape[-1]
    three_o = w.shape[0]
    O = three_o // 3
    y = x.reshape(-1, H).astype(jnp.float32) @ w.astype(jnp.float32).T
    y = y + b.astype(jnp.float32)
    df = 2.0 + jax.nn.softplus(y[:, :O])
    loc = y[:, O:2 * O]
    scale = jnp.maximum(jax.nn.softplus(y[:, 2 * O:]), FLOAT32_EPS)
    shape = lead if O == 1 else lead + (O,)
    return df.reshape(shape), loc.reshape(shape), scale.reshape(shape)


def _check(x, w, b, target_scale, atol, rtol):
    df, loc, scale = studentt_head_forward(x, w, b, target_scale)
    jax.block_until_ready((df, loc, scale))
    rdf, rloc, rscale = _reference(x, w, b)
    assert df.shape == rdf.shape and loc.shape == rloc.shape and scale.shape == rscale.shape
    assert jnp.allclose(df, rdf, atol=atol, rtol=rtol)
    assert jnp.allclose(loc, rloc, atol=atol, rtol=rtol)
    assert jnp.allclose(scale, rscale, atol=atol, rtol=rtol)


if __name__ == "__main__":
    key = jax.random.PRNGKey(0)
    kx, kp, kt, kx2, kp2, kx3, kp3 = jax.random.split(key, 7)

    # --- small f32 check, O=1 (module's default usage); single-block path ---
    batch, seq, hidden, output = 2, 8, 32, 1
    x = jax.random.normal(kx, (batch, seq, hidden), dtype=jnp.float32)
    target_scale = jax.random.uniform(kt, (batch, 1), dtype=jnp.float32)  # unused, as in torch
    w, b = init_params(kp, hidden, output)
    _check(x, w, b, target_scale, atol=1e-5, rtol=1e-5)

    # --- small f32 check, O=2 (exercises the (..., O) output path) ---
    x3 = jax.random.normal(kx3, (batch, seq, hidden), dtype=jnp.float32)
    w3, b3 = init_params(kp3, hidden, 2)
    _check(x3, w3, b3, None, atol=1e-5, rtol=1e-5)

    # --- bf16 fast path, N = 2600 (gridded, megacore-split, ragged tail) ---
    batch2, seq2, hidden2 = 4, 650, 128   # N = 2600 -> TM = 640, grid = 5
    x2 = jax.random.normal(kx2, (batch2, seq2, hidden2),
                           dtype=jnp.float32).astype(jnp.bfloat16)
    w2, b2 = init_params(kp2, hidden2, 1)
    w2 = w2.astype(jnp.bfloat16)
    _check(x2, w2, b2, None, atol=2e-2, rtol=2e-2)

    print("KERNEL_OK")
</pallas_src>

<mosaic_0001>
module attributes {stable_mosaic.version = 11 : i64} {
  func.func @_studentt_head_kernel(%arg0: i32, %arg1: memref<16x32xf32, #tpu.memory_space<vmem>>, %arg2: memref<32x3xf32, #tpu.memory_space<vmem>>, %arg3: memref<1x3xf32, #tpu.memory_space<vmem>>, %arg4: memref<16x3xf32, #tpu.memory_space<vmem>>) attributes {dimension_semantics = [#tpu.dimension_semantics<parallel>], iteration_bounds = array<i64: 1>, scalar_prefetch = 0 : i64, scratch_operands = 0 : i64, tpu.core_type = #tpu.core_type<tc>, window_params = [{transform_indices = @transform_0, window_bounds = array<i64: 16, 32>}, {pipeline_mode = #tpu.pipeline_mode<synchronous>, transform_indices = @transform_1, window_bounds = array<i64: 32, 3>}, {pipeline_mode = #tpu.pipeline_mode<synchronous>, transform_indices = @transform_2, window_bounds = array<i64: 1, 3>}, {transform_indices = @transform_3, window_bounds = array<i64: 16, 3>}]} {
    %c0 = arith.constant 0 : index
    %c0_0 = arith.constant 0 : index
    %0 = vector.load %arg1[%c0, %c0_0] : memref<16x32xf32, #tpu.memory_space<vmem>>, vector<16x32xf32>
    %c0_1 = arith.constant 0 : index
    %c0_2 = arith.constant 0 : index
    %1 = vector.load %arg2[%c0_1, %c0_2] : memref<32x3xf32, #tpu.memory_space<vmem>>, vector<32x3xf32>
    %cst = arith.constant dense<0.000000e+00> : vector<16x3xf32>
    %2 = tpu.matmul %0, %1, %cst {dimension_numbers = #tpu.dot_dimension_numbers<[1], [0], [0], [1], [0, 0, 1, 1], [], []>} : vector<16x32xf32>, vector<32x3xf32>, vector<16x3xf32> -> vector<16x3xf32>
    %c0_3 = arith.constant 0 : index
    %c0_4 = arith.constant 0 : index
    %3 = vector.load %arg3[%c0_3, %c0_4] : memref<1x3xf32, #tpu.memory_space<vmem>>, vector<1x3xf32>
    %4 = vector.broadcast %3 : vector<1x3xf32> to vector<16x3xf32>
    %5 = arith.addf %2, %4 : vector<16x3xf32>
    %cst_5 = arith.constant 0.000000e+00 : f32
    %6 = vector.broadcast %cst_5 : f32 to vector<16x3xf32>
    %7 = arith.maximumf %5, %6 : vector<16x3xf32>
    %8 = math.absf %5 : vector<16x3xf32>
    %cst_6 = arith.constant 0.000000e+00 : f32
    %9 = vector.broadcast %cst_6 : f32 to vector<16x3xf32>
    %10 = arith.subf %9, %8 : vector<16x3xf32>
    %11 = math.exp %10 : vector<16x3xf32>
    %cst_7 = arith.constant 1.000000e+00 : f32
    %12 = vector.broadcast %cst_7 : f32 to vector<16x3xf32>
    %13 = arith.addf %12, %11 : vector<16x3xf32>
    %14 = math.log %13 : vector<16x3xf32>
    %15 = arith.addf %7, %14 : vector<16x3xf32>
    %16 = tpu.iota {dimensions = array<i32: 1>} : vector<16x3xi32>
    %c1_i32 = arith.constant 1 : i32
    %17 = vector.broadcast %c1_i32 : i32 to vector<16x3xi32>
    %18 = arith.cmpi slt, %16, %17 : vector<16x3xi32>
    %cst_8 = arith.constant 2.000000e+00 : f32
    %19 = vector.broadcast %cst_8 : f32 to vector<16x3xf32>
    %20 = arith.addf %19, %15 : vector<16x3xf32>
    %cst_9 = arith.constant 1.1920929E-7 : f32
    %21 = vector.broadcast %cst_9 : f32 to vector<16x3xf32>
    %22 = arith.maximumf %15, %21 : vector<16x3xf32>
    %23 = arith.select %18, %20, %22 : vector<16x3xi1>, vector<16x3xf32>
    %c1_i32_10 = arith.constant 1 : i32
    %24 = vector.broadcast %c1_i32_10 : i32 to vector<16x3xi32>
    %25 = arith.cmpi sge, %16, %24 : vector<16x3xi32>
    %c2_i32 = arith.constant 2 : i32
    %26 = vector.broadcast %c2_i32 : i32 to vector<16x3xi32>
    %27 = arith.cmpi slt, %16, %26 : vector<16x3xi32>
    %28 = arith.andi %25, %27 : vector<16x3xi1>
    %29 = arith.select %28, %5, %23 : vector<16x3xi1>, vector<16x3xf32>
    %c0_11 = arith.constant 0 : index
    %c0_12 = arith.constant 0 : index
    %30 = vector.load %arg4[%c0_11, %c0_12] : memref<16x3xf32, #tpu.memory_space<vmem>>, vector<16x3xf32>
    tpu.vector_store %arg4[%c0_11, %c0_12], %29 {strides = array<i32>} : memref<16x3xf32, #tpu.memory_space<vmem>>, vector<16x3xf32>,
    return
  }
  func.func @transform_0(%arg0: i32) -> (i32, i32) {
    %c0_i32 = arith.constant 0 : i32
    %c0_i32_0 = arith.constant 0 : i32
    return %arg0, %c0_i32 : i32, i32
  }
  func.func @transform_1(%arg0: i32) -> (i32, i32) {
    %c0_i32 = arith.constant 0 : i32
    %c0_i32_0 = arith.constant 0 : i32
    %c0_i32_1 = arith.constant 0 : i32
    return %c0_i32, %c0_i32_0 : i32, i32
  }
  func.func @transform_2(%arg0: i32) -> (i32, i32) {
    %c0_i32 = arith.constant 0 : i32
    %c0_i32_0 = arith.constant 0 : i32
    %c0_i32_1 = arith.constant 0 : i32
    return %c0_i32, %c0_i32_0 : i32, i32
  }
  func.func @transform_3(%arg0: i32) -> (i32, i32) {
    %c0_i32 = arith.constant 0 : i32
    %c0_i32_0 = arith.constant 0 : i32
    return %arg0, %c0_i32 : i32, i32
  }
}

</mosaic_0001>

<llo_original>
// kernel: tpu_custom_call.1
$region0: #{tpu_custom_call.1}
  #allocation0 [shape = 'u32[]', space=smem, size = 0x4, offset = 0x4, fixed_abs, tag = 'smem constant byte address 0x4 - core index']
  #allocation1 [shape = 'u32[72,128]{1,0:T(1,128)}', space=vmem, size = 0x9000, scoped, tag = 'internal scratch']
  %s0 = inlined_call_operand.vmem [shape: f32[16,32], index: 0, kind: input, shape index: {}]
  %s1 = inlined_call_operand.vmem [shape: f32[32,3], index: 1, kind: input, shape index: {}]
  %s2 = inlined_call_operand.vmem [shape: f32[1,3], index: 2, kind: input, shape index: {}]
  %s3 = inlined_call_operand.vmem [shape: f32[16,3], index: 3, kind: output, shape index: {}]
  %s4 = sld [smem:[#allocation0]]
  $region22: #{tpu_custom_call.1} parent=0
    _
  %s6 = ssub.s32 1, %s4
  %s7 = scalar_select 0, %s6, %s4
  // Predicated region
  $region2: #{tpu_custom_call.1} parent=0 // pred_check
    _
  $region3: #{tpu_custom_call.1} parent=0 // pred_check_branch
    %9 = sbr.rel (0) target = $region5
  $region4: #{tpu_custom_call.1} parent=0 // pred_region
    _
  $region5: #{tpu_custom_call.1} parent=0 // pred_fallthru
    _
  // Predicated region
  $region6: #{tpu_custom_call.1} parent=0 // pred_check
    _
  $region7: #{tpu_custom_call.1} parent=0 // pred_check_branch
    %11 = sbr.rel (0) target = $region9
  $region8: #{tpu_custom_call.1} parent=0 // pred_region
    _
  $region9: #{tpu_custom_call.1} parent=0 // pred_fallthru
    _
  // Predicated region
  $region10: #{tpu_custom_call.1} parent=0 // pred_check
    _
  $region11: #{tpu_custom_call.1} parent=0 // pred_check_branch
    %13 = sbr.rel (0) target = $region13
  $region12: #{tpu_custom_call.1} parent=0 // pred_region
    _
  $region13: #{tpu_custom_call.1} parent=0 // pred_fallthru
    _
  %v14 = vld [vmem:[%s0] sm:$0xff]
  %v15 = vld [vmem:[%s0 + $0x8] sm:$0xff]
  %v16 = vld [vmem:[%s1] sm:$0xff]
  %v17 = vld [vmem:[%s1 + $0x8] sm:$0xff]
  %v18 = vld [vmem:[%s1 + $0x10] sm:$0xff]
  %v19 = vld [vmem:[%s1 + $0x18] sm:$0xff]
  %v20 = vld [vmem:[%s2] sm:$0x1]
  %v22 = vperm.slane %v20, 0
  %vm24 = vcmask 261120
  %v26 = vsel %vm24, %v14, 0
  %v29 = vsel %vm24, %v15, 0
  %31 = vmatpush.msra.mxu0 0.0
  %32 = vmatpush.msra.mxu0 0.0
  %33 = vmatpush.msra.mxu0 0.0
  %34 = vmatpush.msra.mxu0 0.0
  %35 = vmatpush.msra.mxu0 0.0
  %36 = vmatpush.msra.mxu0 0.0
  %37 = vmatpush.msra.mxu0 0.0
  %38 = vmatpush.msra.mxu0 0.0
  %39 = vmatpush.msra.mxu0 0.0
  %40 = vmatpush.msra.mxu0 0.0
  %41 = vmatpush.msra.mxu0 0.0
  %42 = vmatpush.msra.mxu0 0.0
  %43 = vmatpush.msra.mxu0 %v19
  %44 = vmatpush.msra.mxu0 %v18
  %45 = vmatpush.msra.mxu0 %v17
  %46 = vmatpush.msra.mxu0 %v16
  %47 = vmatmul.f32.gmra.mxu0 %v26
  %v48 = vpop.f32.mrf.mxu0
  %v49 = vadd.f32 %v22, %v48
  %50 = vmatmul.f32.gmra.mxu0 %v29
  %v51 = vpop.f32.mrf.mxu0
  %v52 = vadd.f32 %v22, %v51
  %53 = vdwg.mxu0
  %v54 = vmax.f32 %v49, 0.0
  %v55 = vmax.f32 %v52, 0.0
  %v56 = vand.u32 2147483647, %v49
  %v57 = vand.u32 2147483647, %v52
  %v58 = vsub.f32 0.0, %v56
  %v59 = vsub.f32 0.0, %v57
  %v60 = vmul.f32 %v58, 1.442695
  %v61 = vpow.pop %v60
  %v62 = vmul.f32 %v59, 1.442695
  %v63 = vpow.pop %v62
  %v64 = vadd.f32 %v61, 1.0
  %v65 = vadd.f32 %v63, 1.0
  %v66 = vlog2.pop %v64
  %v67 = vmul.f32 %v66, 0.6931472
  %v68 = vlog2.pop %v65
  %v69 = vmul.f32 %v68, 0.6931472
  %v70 = vadd.f32 %v54, %v67
  %v71 = vadd.f32 %v55, %v69
  %v72 = vlaneseq
  %v73 = vand.u32 %v72, 127
  %vm74 = vcmp.lt.s32.totalorder %v73, 1
  %v75 = vadd.f32 %v70, 2.0
  %v76 = vadd.f32 %v71, 2.0
  %v77 = vmax.f32 %v70, 1.1920929e-07
  %v78 = vmax.f32 %v71, 1.1920929e-07
  %v79 = vsel %vm74, %v75, %v77
  %v80 = vsel %vm74, %v76, %v78
  %vm81 = vcmp.ge.s32.totalorder %v73, 1
  %vm82 = vcmp.lt.s32.totalorder %v73, 2
  %vm83 = vmand %vm81, %vm82
  %v84 = vsel %vm83, %v49, %v79
  %v85 = vsel %vm83, %v52, %v80
  %vm86 = vcmask 23552
  %87 = vst.msk [vmem:[%s3] sm:$0xff] %vm86, %v84
  %88 = vst.msk [vmem:[%s3 + $0x8] sm:$0xff] %vm86, %v85
  // Predicated region
  $region14: #{tpu_custom_call.1} parent=0 // pred_check
    _
  $region15: #{tpu_custom_call.1} parent=0 // pred_check_branch
    %90 = sbr.rel (0) target = $region17
  $region16: #{tpu_custom_call.1} parent=0 // pred_region
    _
  $region17: #{tpu_custom_call.1} parent=0 // pred_fallthru
    _
  // Predicated region
  $region18: #{tpu_custom_call.1} parent=0 // pred_check
    _
  $region19: #{tpu_custom_call.1} parent=0 // pred_check_branch
    %92 = sbr.rel (0) target = $region21
  $region20: #{tpu_custom_call.1} parent=0 // pred_region
    _
  $region21: #{tpu_custom_call.1} parent=0 // pred_fallthru
    _

</llo_original>
